<compile_context>
chip_gen: v6e
topology: v6e:2x2x1
jax: 0.10.0
libtpu: 0.0.40
codegen_flags: <defaults>
</compile_context>

<pallas_src>
import functools

import jax
import jax.numpy as jnp
from jax.experimental import pallas as pl
from jax.experimental.pallas import tpu as pltpu

LANE = 128
SUBLANE_BF16 = 16


def _round_up(x, m):
    return (x + m - 1) // m * m


def _vmem_limits():
    """Returns (vmem_limit_bytes for the compiler, VMEM budget for block picking)."""
    cap = 64 * 1024 * 1024
    try:
        info = pltpu.get_tpu_info()
        cap = int(getattr(info, "vmem_capacity_bytes", cap) or cap)
    except Exception:
        pass
    # Leave headroom for compiler-internal scratch: 128-MiB parts -> ~100 MiB,
    # 64-MiB parts (v7x) -> 48 MiB.
    limit = max(32 * 1024 * 1024, min(cap - 16 * 1024 * 1024, 100 * 1024 * 1024))
    budget = int(limit * 0.55)
    return limit, budget


def _pick_batch_block(N, L, lpad, Cip, Cop, K, budget_bytes):
    """Largest batch block whose full working set fits the VMEM budget, while
    keeping >= 2 grid steps when N >= 2 (v7x has 2 TensorCores per chip)."""
    Lp = L + lpad
    per_batch = (
        2 * L * Cip * 2          # double-buffered bf16 input block
        + 2 * L * Cop * 2        # double-buffered bf16 output block
        + Lp * Cip * 2           # x re-pad scratch (bf16)
        + Lp * Cop * 2           # h re-pad scratch (bf16)
        + L * K * Cip * 2        # conv1 im2col operand (bf16)
        + L * K * Cop * 2        # conv2 im2col operand (bf16)
        + 3 * L * Cop * 4        # f32 live accumulators (acc / acc2 / out)
    )
    fixed = (2 * (K * Cip * Cop + K * Cop * Cop + Cip * Cop) * 2   # dbl-buffered weights
             + 3 * 2 * Cop * 4)                                    # biases
    nb = max(1, int((budget_bytes - fixed) // max(per_batch, 1)))
    nb = min(nb, N)
    if N >= 2:
        nb = min(nb, -(-N // 2))      # guarantee at least 2 grid steps
    return max(nb, 1)


def _temporal_block_kernel(*refs, K, dilation, pad, lpad, has_downsample):
    """One batch block per grid step.

    refs (in order):
      x_ref  : (Nb, L, Cip)        bf16 lane-padded NLC input block
      w1_ref : (K*Cip, Cop)        bf16 conv1 weights, tap-folded
      b1_ref : (1, Cop)            f32
      w2_ref : (K*Cop, Cop)        bf16 conv2 weights, tap-folded
      b2_ref : (1, Cop)            f32
      [wd_ref: (Cip, Cop) bf16, bd_ref: (1, Cop) f32]   only if has_downsample
      alpha_ref : (3,) SMEM        f32 PReLU alphas
      o_ref  : (Nb, L, Cop)        bf16 output block
      x_scr  : (Nb, lpad+L, Cip)   bf16 VMEM scratch (causally padded input)
      h_scr  : (Nb, lpad+L, Cop)   bf16 VMEM scratch (causally padded conv1 out)
    """
    if has_downsample:
        (x_ref, w1_ref, b1_ref, w2_ref, b2_ref, wd_ref, bd_ref,
         alpha_ref, o_ref, x_scr, h_scr) = refs
    else:
        (x_ref, w1_ref, b1_ref, w2_ref, b2_ref,
         alpha_ref, o_ref, x_scr, h_scr) = refs
        wd_ref = bd_ref = None

    Nb, L, Cop = o_ref.shape
    Cip = x_ref.shape[2]
    M = Nb * L
    off = lpad - pad           # first-tap offset inside the over-aligned left pad

    # Causal left zero pad lives in persistent VMEM scratch.  Pad rows are
    # re-zeroed every step (cheap): with a core-sharded "parallel" grid not
    # every core sees program_id == 0, so pl.when(pid == 0) would be unsafe.
    if lpad > 0:
        x_scr[:, :lpad, :] = jnp.zeros((Nb, lpad, Cip), x_scr.dtype)
        h_scr[:, :lpad, :] = jnp.zeros((Nb, lpad, Cop), h_scr.dtype)
    x_scr[:, lpad:, :] = x_ref[...]

    # ---- conv1: im2col along lanes (contraction depth K*Cip), one MXU matmul ----
    xs = jnp.concatenate(
        [x_scr[:, off + k * dilation: off + k * dilation + L, :] for k in range(K)],
        axis=-1)                                            # (Nb, L, K*Cip) bf16
    acc = jnp.dot(xs.reshape(M, K * Cip), w1_ref[...],
                  preferred_element_type=jnp.float32)       # (M, Cop) f32
    acc += b1_ref[...]
    a1 = alpha_ref[0]
    acc = jnp.where(acc > 0, acc, a1 * acc)                 # PReLU1
    # dropout1: identity (inference)

    # Re-pad intermediate for conv2; store offset lpad is sublane-aligned.
    h_scr[:, lpad:, :] = acc.reshape(Nb, L, Cop).astype(h_scr.dtype)

    # ---- conv2: same im2col fold on the padded intermediate ----
    hs = jnp.concatenate(
        [h_scr[:, off + k * dilation: off + k * dilation + L, :] for k in range(K)],
        axis=-1)                                            # (Nb, L, K*Cop) bf16
    acc2 = jnp.dot(hs.reshape(M, K * Cop), w2_ref[...],
                   preferred_element_type=jnp.float32)
    acc2 += b2_ref[...]
    a2 = alpha_ref[1]
    acc2 = jnp.where(acc2 > 0, acc2, a2 * acc2)             # PReLU2
    # dropout2: identity (inference)

    # ---- residual path + final PReLU ----
    x0 = x_ref[...].reshape(M, Cip)
    if has_downsample:
        res = jnp.dot(x0, wd_ref[...],
                      preferred_element_type=jnp.float32) + bd_ref[...]
    else:
        res = x0.astype(jnp.float32)       # Cin == Cout, lane padding matches
    out = acc2 + res
    a3 = alpha_ref[2]
    out = jnp.where(out > 0, out, a3 * out)                 # final PReLU
    o_ref[...] = out.reshape(Nb, L, Cop).astype(o_ref.dtype)


def temporal_block_pallas_nlc(x_nlc, w1, b1, w2, b2, wd, bd, alphas, *,
                              kernel_size, dilation, stride=1):
    """Core TCN block on lane-padded NLC bf16 activations.

    x_nlc: (N, L, Cip) bf16 with Cip % 128 == 0 and channels >= Cin zeroed.
    Returns (N, L, Cop) bf16, Cop = round_up(Cout, 128).  Chain several blocks
    in this layout and convert to NCL/f32 only once at the end of the stack.
    """
    assert stride == 1, "TemporalBlock chomp math requires stride == 1"
    N, L, Cip = x_nlc.shape
    assert Cip % LANE == 0
    Cout, Cin, K = w1.shape
    assert K == kernel_size and Cin <= Cip
    Cop = _round_up(Cout, LANE)
    has_downsample = wd is not None
    if not has_downsample:
        assert Cin == Cout and Cip == Cop, "identity residual needs Cin == Cout"

    pad = (K - 1) * dilation                 # == `padding` arg of the PyTorch module
    lpad = _round_up(pad, SUBLANE_BF16)      # sublane-aligned left pad in scratch

    # OIW -> tap-major channel-last, lane-padded, folded to (K*Cin_p, Cout_p).
    def fold_w(w, cin, cin_p):
        wk = jnp.transpose(w, (2, 1, 0)).astype(jnp.bfloat16)         # (K, cin, Cout)
        wk = jnp.pad(wk, ((0, 0), (0, cin_p - cin), (0, Cop - Cout)))
        return wk.reshape(K * cin_p, Cop)

    w1_f = fold_w(w1, Cin, Cip)
    w2_f = fold_w(w2, Cout, Cop)
    b1_r = jnp.pad(b1.astype(jnp.float32).reshape(1, Cout), ((0, 0), (0, Cop - Cout)))
    b2_r = jnp.pad(b2.astype(jnp.float32).reshape(1, Cout), ((0, 0), (0, Cop - Cout)))
    alphas = alphas.astype(jnp.float32)

    vmem_limit, vmem_budget = _vmem_limits()
    Nb = _pick_batch_block(N, L, lpad, Cip, Cop, K, vmem_budget)
    n_blocks = -(-N // Nb)
    Npad = n_blocks * Nb
    if Npad != N:                            # remainder block: pad batch with zeros
        x_nlc = jnp.pad(x_nlc, ((0, Npad - N), (0, 0), (0, 0)))

    args = [x_nlc, w1_f, b1_r, w2_f, b2_r]
    in_specs = [
        pl.BlockSpec((Nb, L, Cip), lambda b: (b, 0, 0)),
        # Weights/biases are grid-invariant (same block revisited every step).
        pl.BlockSpec((K * Cip, Cop), lambda b: (0, 0)),
        pl.BlockSpec((1, Cop), lambda b: (0, 0)),
        pl.BlockSpec((K * Cop, Cop), lambda b: (0, 0)),
        pl.BlockSpec((1, Cop), lambda b: (0, 0)),
    ]
    wd_bytes = 0
    if has_downsample:
        wd_r = jnp.pad(jnp.transpose(wd[:, :, 0], (1, 0)).astype(jnp.bfloat16),
                       ((0, Cip - Cin), (0, Cop - Cout)))              # (Cip, Cop)
        bd_r = jnp.pad(bd.astype(jnp.float32).reshape(1, Cout),
                       ((0, 0), (0, Cop - Cout)))
        args += [wd_r, bd_r]
        in_specs += [pl.BlockSpec((Cip, Cop), lambda b: (0, 0)),
                     pl.BlockSpec((1, Cop), lambda b: (0, 0))]
        wd_bytes = wd_r.size * 2 + bd_r.size * 4
    args.append(alphas)
    in_specs.append(pl.BlockSpec(memory_space=pltpu.SMEM))

    flops = 2 * Npad * L * K * (Cip * Cop + Cop * Cop)
    if has_downsample:
        flops += 2 * Npad * L * Cip * Cop
    bytes_accessed = (Npad * L * Cip * 2 + w1_f.size * 2 + w2_f.size * 2 + wd_bytes
                      + (b1_r.size + b2_r.size) * 4 + Npad * L * Cop * 2)
    cost = pl.CostEstimate(flops=int(flops), transcendentals=0,
                           bytes_accessed=int(bytes_accessed))

    kern = functools.partial(_temporal_block_kernel, K=K, dilation=dilation,
                             pad=pad, lpad=lpad, has_downsample=has_downsample)

    out = pl.pallas_call(
        kern,
        out_shape=jax.ShapeDtypeStruct((Npad, L, Cop), jnp.bfloat16),
        grid=(n_blocks,),
        in_specs=in_specs,
        out_specs=pl.BlockSpec((Nb, L, Cop), lambda b: (b, 0, 0)),
        scratch_shapes=[pltpu.VMEM((Nb, lpad + L, Cip), jnp.bfloat16),
                        pltpu.VMEM((Nb, lpad + L, Cop), jnp.bfloat16)],
        compiler_params=pltpu.CompilerParams(
            dimension_semantics=("parallel",),      # batch blocks are independent
            vmem_limit_bytes=int(vmem_limit)),
        cost_estimate=cost,
    )(*args)
    return out[:N] if Npad != N else out


# --------------------------- layout helpers / wrapper ------------------------

def to_nlc(x_ncl):
    """NCL f32 -> lane-padded NLC bf16 (do this once per TCN stack)."""
    N, C, L = x_ncl.shape
    Cp = _round_up(C, LANE)
    x = jnp.transpose(x_ncl, (0, 2, 1)).astype(jnp.bfloat16)
    return jnp.pad(x, ((0, 0), (0, 0), (0, Cp - C)))


def from_nlc(x_nlc, C, dtype=jnp.float32):
    """Lane-padded NLC bf16 -> NCL (do this once at the end of the stack)."""
    return jnp.transpose(x_nlc[:, :, :C], (0, 2, 1)).astype(dtype)


def temporal_block_pallas(x_ncl, w1, b1, w2, b2, wd, bd, alphas, *,
                          kernel_size, dilation, stride=1):
    """Convenience single-block wrapper: NCL f32 in, NCL f32 out."""
    Cout = w1.shape[0]
    out_nlc = temporal_block_pallas_nlc(
        to_nlc(x_ncl), w1, b1, w2, b2, wd, bd, alphas,
        kernel_size=kernel_size, dilation=dilation, stride=stride)
    return from_nlc(out_nlc, Cout)


# ------------------------- parameter initialization --------------------------

def _weight_norm_conv_weight(key, out_c, in_c, k, std=0.01):
    """weight_norm(nn.Conv1d).weight semantics: w = g * v / ||v||, dim=0."""
    v = std * jax.random.normal(key, (out_c, in_c, k), jnp.float32)
    norm = jnp.sqrt(jnp.sum(v * v, axis=(1, 2), keepdims=True))
    g = norm
    return g * v / norm                      # (Cout, Cin, K), numerically == v


def make_params(key, n_inputs, n_outputs, kernel_size):
    ks = jax.random.split(key, 6)
    w1 = _weight_norm_conv_weight(ks[0], n_outputs, n_inputs, kernel_size)
    w2 = _weight_norm_conv_weight(ks[1], n_outputs, n_outputs, kernel_size)
    b1 = jax.random.uniform(ks[2], (n_outputs,), jnp.float32, -0.1, 0.1)
    b2 = jax.random.uniform(ks[3], (n_outputs,), jnp.float32, -0.1, 0.1)
    if n_inputs != n_outputs:
        wd = 0.01 * jax.random.normal(ks[4], (n_outputs, n_inputs, 1), jnp.float32)
        bd = jax.random.uniform(ks[5], (n_outputs,), jnp.float32, -0.1, 0.1)
    else:
        wd, bd = None, None
    alphas = jnp.array([0.25, 0.25, 0.25], jnp.float32)   # PReLU default init
    return w1, b1, w2, b2, wd, bd, alphas


# ----------------------------- pure-JAX reference ----------------------------

def ref_forward(x_ncl, w1, b1, w2, b2, wd, bd, alphas, *, kernel_size, dilation):
    L = x_ncl.shape[2]
    pad = (kernel_size - 1) * dilation

    def conv1d(x, w, b, dil, p):
        y = jax.lax.conv_general_dilated(
            x, w, window_strides=(1,), padding=[(p, p)],
            rhs_dilation=(dil,), dimension_numbers=('NCH', 'OIH', 'NCH'))
        return y + b[None, :, None]

    def prelu(x, a):
        return jnp.where(x > 0, x, a * x)

    o = conv1d(x_ncl, w1, b1, dilation, pad)[:, :, :L]       # chomp1
    o = prelu(o, alphas[0])
    o = conv1d(o, w2, b2, dilation, pad)[:, :, :L]           # chomp2
    o = prelu(o, alphas[1])
    res = x_ncl if wd is None else conv1d(x_ncl, wd, bd, 1, 0)
    return prelu(o + res, alphas[2])


if __name__ == "__main__":
    # Small shapes: batch=2, n_inputs=8, n_outputs=16, seq_len=16,
    # kernel_size=3, stride=1, dilation=2, padding=(3-1)*2=4.
    N, Cin, Cout, L = 2, 8, 16, 16
    K, dilation = 3, 2

    key = jax.random.PRNGKey(0)
    kx, kp = jax.random.split(key)
    x = jax.random.normal(kx, (N, Cin, L), jnp.float32)
    w1, b1, w2, b2, wd, bd, alphas = make_params(kp, Cin, Cout, K)

    out = temporal_block_pallas(x, w1, b1, w2, b2, wd, bd, alphas,
                                kernel_size=K, dilation=dilation)
    out = jax.block_until_ready(out)

    ref = ref_forward(x, w1, b1, w2, b2, wd, bd, alphas,
                      kernel_size=K, dilation=dilation)
    assert out.shape == (N, Cout, L)
    # bf16 activations / bf16 output vs f32 reference -> loosened tolerance.
    assert jnp.allclose(out, ref, atol=2.5e-2, rtol=2.5e-2), "mismatch vs JAX reference"

    print("KERNEL_OK")
</pallas_src>

<mosaic_0001>
module attributes {stable_mosaic.version = 11 : i64} {
  func.func @_temporal_block_kernel(%arg0: i32, %arg1: memref<1x16x128xbf16, #tpu.memory_space<vmem>>, %arg2: memref<384x128xbf16, #tpu.memory_space<vmem>>, %arg3: memref<1x128xf32, #tpu.memory_space<vmem>>, %arg4: memref<384x128xbf16, #tpu.memory_space<vmem>>, %arg5: memref<1x128xf32, #tpu.memory_space<vmem>>, %arg6: memref<128x128xbf16, #tpu.memory_space<vmem>>, %arg7: memref<1x128xf32, #tpu.memory_space<vmem>>, %arg8: memref<3xf32, #tpu.memory_space<smem>>, %arg9: memref<1x16x128xbf16, #tpu.memory_space<vmem>>, %arg10: memref<1x32x128xbf16, #tpu.memory_space<vmem>>, %arg11: memref<1x32x128xbf16, #tpu.memory_space<vmem>>) attributes {dimension_semantics = [#tpu.dimension_semantics<parallel>], iteration_bounds = array<i64: 2>, scalar_prefetch = 0 : i64, scratch_operands = 2 : i64, tpu.core_type = #tpu.core_type<tc>, window_params = [{transform_indices = @transform_0, window_bounds = array<i64: 1, 16, 128>}, {pipeline_mode = #tpu.pipeline_mode<synchronous>, transform_indices = @transform_1, window_bounds = array<i64: 384, 128>}, {pipeline_mode = #tpu.pipeline_mode<synchronous>, transform_indices = @transform_2, window_bounds = array<i64: 1, 128>}, {pipeline_mode = #tpu.pipeline_mode<synchronous>, transform_indices = @transform_3, window_bounds = array<i64: 384, 128>}, {pipeline_mode = #tpu.pipeline_mode<synchronous>, transform_indices = @transform_4, window_bounds = array<i64: 1, 128>}, {pipeline_mode = #tpu.pipeline_mode<synchronous>, transform_indices = @transform_5, window_bounds = array<i64: 128, 128>}, {pipeline_mode = #tpu.pipeline_mode<synchronous>, transform_indices = @transform_6, window_bounds = array<i64: 1, 128>}, {transform_indices = @transform_7, window_bounds = array<i64: 3>}, {transform_indices = @transform_8, window_bounds = array<i64: 1, 16, 128>}]} {
    %cst = arith.constant 0.000000e+00 : bf16
    %0 = vector.broadcast %cst : bf16 to vector<1x16x128xbf16>
    %c0 = arith.constant 0 : index
    %c0_0 = arith.constant 0 : index
    %c0_1 = arith.constant 0 : index
    %1 = vector.load %arg10[%c0, %c0_0, %c0_1] : memref<1x32x128xbf16, #tpu.memory_space<vmem>>, vector<1x16x128xbf16>
    tpu.vector_store %arg10[%c0, %c0_0, %c0_1], %0 {strides = array<i32>} : memref<1x32x128xbf16, #tpu.memory_space<vmem>>, vector<1x16x128xbf16>,
    %cst_2 = arith.constant 0.000000e+00 : bf16
    %2 = vector.broadcast %cst_2 : bf16 to vector<1x16x128xbf16>
    %c0_3 = arith.constant 0 : index
    %c0_4 = arith.constant 0 : index
    %c0_5 = arith.constant 0 : index
    %3 = vector.load %arg11[%c0_3, %c0_4, %c0_5] : memref<1x32x128xbf16, #tpu.memory_space<vmem>>, vector<1x16x128xbf16>
    tpu.vector_store %arg11[%c0_3, %c0_4, %c0_5], %2 {strides = array<i32>} : memref<1x32x128xbf16, #tpu.memory_space<vmem>>, vector<1x16x128xbf16>,
    %c0_6 = arith.constant 0 : index
    %c0_7 = arith.constant 0 : index
    %c0_8 = arith.constant 0 : index
    %4 = vector.load %arg1[%c0_6, %c0_7, %c0_8] : memref<1x16x128xbf16, #tpu.memory_space<vmem>>, vector<1x16x128xbf16>
    %c0_9 = arith.constant 0 : index
    %c16 = arith.constant 16 : index
    %c0_10 = arith.constant 0 : index
    %5 = vector.load %arg10[%c0_9, %c16, %c0_10] : memref<1x32x128xbf16, #tpu.memory_space<vmem>>, vector<1x16x128xbf16>
    tpu.vector_store %arg10[%c0_9, %c16, %c0_10], %4 {strides = array<i32>} : memref<1x32x128xbf16, #tpu.memory_space<vmem>>, vector<1x16x128xbf16>,
    %c0_11 = arith.constant 0 : index
    %c12 = arith.constant 12 : index
    %c0_12 = arith.constant 0 : index
    %6 = vector.load %arg10[%c0_11, %c12, %c0_12] : memref<1x32x128xbf16, #tpu.memory_space<vmem>>, vector<1x16x128xbf16>
    %c0_13 = arith.constant 0 : index
    %c14 = arith.constant 14 : index
    %c0_14 = arith.constant 0 : index
    %7 = vector.load %arg10[%c0_13, %c14, %c0_14] : memref<1x32x128xbf16, #tpu.memory_space<vmem>>, vector<1x16x128xbf16>
    %c0_15 = arith.constant 0 : index
    %c16_16 = arith.constant 16 : index
    %c0_17 = arith.constant 0 : index
    %8 = vector.load %arg10[%c0_15, %c16_16, %c0_17] : memref<1x32x128xbf16, #tpu.memory_space<vmem>>, vector<1x16x128xbf16>
    %9 = tpu.concatenate %6, %7, %8 in 2 : vector<1x16x128xbf16>, vector<1x16x128xbf16>, vector<1x16x128xbf16> -> vector<1x16x384xbf16>
    %10 = vector.shape_cast %9 : vector<1x16x384xbf16> to vector<16x384xbf16>
    %c0_18 = arith.constant 0 : index
    %c0_19 = arith.constant 0 : index
    %11 = vector.load %arg2[%c0_18, %c0_19] : memref<384x128xbf16, #tpu.memory_space<vmem>>, vector<384x128xbf16>
    %cst_20 = arith.constant dense<0.000000e+00> : vector<16x128xf32>
    %12 = tpu.matmul %10, %11, %cst_20 {dimension_numbers = #tpu.dot_dimension_numbers<[1], [0], [0], [1], [0, 0, 1, 1], [], []>} : vector<16x384xbf16>, vector<384x128xbf16>, vector<16x128xf32> -> vector<16x128xf32>
    %c0_21 = arith.constant 0 : index
    %c0_22 = arith.constant 0 : index
    %13 = vector.load %arg3[%c0_21, %c0_22] : memref<1x128xf32, #tpu.memory_space<vmem>>, vector<1x128xf32>
    %14 = vector.broadcast %13 : vector<1x128xf32> to vector<16x128xf32>
    %15 = arith.addf %12, %14 : vector<16x128xf32>
    %c0_23 = arith.constant 0 : index
    %16 = memref.load %arg8[%c0_23] : memref<3xf32, #tpu.memory_space<smem>>
    %cst_24 = arith.constant 0.000000e+00 : f32
    %17 = vector.broadcast %cst_24 : f32 to vector<16x128xf32>
    %18 = arith.cmpf ogt, %15, %17 : vector<16x128xf32>
    %19 = vector.broadcast %16 : f32 to vector<16x128xf32>
    %20 = arith.mulf %19, %15 : vector<16x128xf32>
    %21 = arith.select %18, %15, %20 : vector<16x128xi1>, vector<16x128xf32>
    %22 = vector.shape_cast %21 : vector<16x128xf32> to vector<1x16x128xf32>
    %23 = arith.truncf %22 : vector<1x16x128xf32> to vector<1x16x128xbf16>
    %c0_25 = arith.constant 0 : index
    %c16_26 = arith.constant 16 : index
    %c0_27 = arith.constant 0 : index
    %24 = vector.load %arg11[%c0_25, %c16_26, %c0_27] : memref<1x32x128xbf16, #tpu.memory_space<vmem>>, vector<1x16x128xbf16>
    tpu.vector_store %arg11[%c0_25, %c16_26, %c0_27], %23 {strides = array<i32>} : memref<1x32x128xbf16, #tpu.memory_space<vmem>>, vector<1x16x128xbf16>,
    %c0_28 = arith.constant 0 : index
    %c12_29 = arith.constant 12 : index
    %c0_30 = arith.constant 0 : index
    %25 = vector.load %arg11[%c0_28, %c12_29, %c0_30] : memref<1x32x128xbf16, #tpu.memory_space<vmem>>, vector<1x16x128xbf16>
    %c0_31 = arith.constant 0 : index
    %c14_32 = arith.constant 14 : index
    %c0_33 = arith.constant 0 : index
    %26 = vector.load %arg11[%c0_31, %c14_32, %c0_33] : memref<1x32x128xbf16, #tpu.memory_space<vmem>>, vector<1x16x128xbf16>
    %c0_34 = arith.constant 0 : index
    %c16_35 = arith.constant 16 : index
    %c0_36 = arith.constant 0 : index
    %27 = vector.load %arg11[%c0_34, %c16_35, %c0_36] : memref<1x32x128xbf16, #tpu.memory_space<vmem>>, vector<1x16x128xbf16>
    %28 = tpu.concatenate %25, %26, %27 in 2 : vector<1x16x128xbf16>, vector<1x16x128xbf16>, vector<1x16x128xbf16> -> vector<1x16x384xbf16>
    %29 = vector.shape_cast %28 : vector<1x16x384xbf16> to vector<16x384xbf16>
    %c0_37 = arith.constant 0 : index
    %c0_38 = arith.constant 0 : index
    %30 = vector.load %arg4[%c0_37, %c0_38] : memref<384x128xbf16, #tpu.memory_space<vmem>>, vector<384x128xbf16>
    %cst_39 = arith.constant dense<0.000000e+00> : vector<16x128xf32>
    %31 = tpu.matmul %29, %30, %cst_39 {dimension_numbers = #tpu.dot_dimension_numbers<[1], [0], [0], [1], [0, 0, 1, 1], [], []>} : vector<16x384xbf16>, vector<384x128xbf16>, vector<16x128xf32> -> vector<16x128xf32>
    %c0_40 = arith.constant 0 : index
    %c0_41 = arith.constant 0 : index
    %32 = vector.load %arg5[%c0_40, %c0_41] : memref<1x128xf32, #tpu.memory_space<vmem>>, vector<1x128xf32>
    %33 = vector.broadcast %32 : vector<1x128xf32> to vector<16x128xf32>
    %34 = arith.addf %31, %33 : vector<16x128xf32>
    %c1 = arith.constant 1 : index
    %35 = memref.load %arg8[%c1] : memref<3xf32, #tpu.memory_space<smem>>
    %cst_42 = arith.constant 0.000000e+00 : f32
    %36 = vector.broadcast %cst_42 : f32 to vector<16x128xf32>
    %37 = arith.cmpf ogt, %34, %36 : vector<16x128xf32>
    %38 = vector.broadcast %35 : f32 to vector<16x128xf32>
    %39 = arith.mulf %38, %34 : vector<16x128xf32>
    %40 = arith.select %37, %34, %39 : vector<16x128xi1>, vector<16x128xf32>
    %c0_43 = arith.constant 0 : index
    %c0_44 = arith.constant 0 : index
    %c0_45 = arith.constant 0 : index
    %41 = vector.load %arg1[%c0_43, %c0_44, %c0_45] : memref<1x16x128xbf16, #tpu.memory_space<vmem>>, vector<1x16x128xbf16>
    %42 = vector.shape_cast %41 : vector<1x16x128xbf16> to vector<16x128xbf16>
    %c0_46 = arith.constant 0 : index
    %c0_47 = arith.constant 0 : index
    %43 = vector.load %arg6[%c0_46, %c0_47] : memref<128x128xbf16, #tpu.memory_space<vmem>>, vector<128x128xbf16>
    %cst_48 = arith.constant dense<0.000000e+00> : vector<16x128xf32>
    %44 = tpu.matmul %42, %43, %cst_48 {dimension_numbers = #tpu.dot_dimension_numbers<[1], [0], [0], [1], [0, 0, 1, 1], [], []>} : vector<16x128xbf16>, vector<128x128xbf16>, vector<16x128xf32> -> vector<16x128xf32>
    %c0_49 = arith.constant 0 : index
    %c0_50 = arith.constant 0 : index
    %45 = vector.load %arg7[%c0_49, %c0_50] : memref<1x128xf32, #tpu.memory_space<vmem>>, vector<1x128xf32>
    %46 = vector.broadcast %45 : vector<1x128xf32> to vector<16x128xf32>
    %47 = arith.addf %44, %46 : vector<16x128xf32>
    %48 = arith.addf %40, %47 : vector<16x128xf32>
    %c2 = arith.constant 2 : index
    %49 = memref.load %arg8[%c2] : memref<3xf32, #tpu.memory_space<smem>>
    %cst_51 = arith.constant 0.000000e+00 : f32
    %50 = vector.broadcast %cst_51 : f32 to vector<16x128xf32>
    %51 = arith.cmpf ogt, %48, %50 : vector<16x128xf32>
    %52 = vector.broadcast %49 : f32 to vector<16x128xf32>
    %53 = arith.mulf %52, %48 : vector<16x128xf32>
    %54 = arith.select %51, %48, %53 : vector<16x128xi1>, vector<16x128xf32>
    %55 = vector.shape_cast %54 : vector<16x128xf32> to vector<1x16x128xf32>
    %56 = arith.truncf %55 : vector<1x16x128xf32> to vector<1x16x128xbf16>
    %c0_52 = arith.constant 0 : index
    %c0_53 = arith.constant 0 : index
    %c0_54 = arith.constant 0 : index
    %57 = vector.load %arg9[%c0_52, %c0_53, %c0_54] : memref<1x16x128xbf16, #tpu.memory_space<vmem>>, vector<1x16x128xbf16>
    tpu.vector_store %arg9[%c0_52, %c0_53, %c0_54], %56 {strides = array<i32>} : memref<1x16x128xbf16, #tpu.memory_space<vmem>>, vector<1x16x128xbf16>,
    return
  }
  func.func @transform_0(%arg0: i32) -> (i32, i32, i32) {
    %c0_i32 = arith.constant 0 : i32
    %c0_i32_0 = arith.constant 0 : i32
    %c0_i32_1 = arith.constant 0 : i32
    return %arg0, %c0_i32, %c0_i32_0 : i32, i32, i32
  }
  func.func @transform_1(%arg0: i32) -> (i32, i32) {
    %c0_i32 = arith.constant 0 : i32
    %c0_i32_0 = arith.constant 0 : i32
    %c0_i32_1 = arith.constant 0 : i32
    return %c0_i32, %c0_i32_0 : i32, i32
  }
  func.func @transform_2(%arg0: i32) -> (i32, i32) {
    %c0_i32 = arith.constant 0 : i32
    %c0_i32_0 = arith.constant 0 : i32
    %c0_i32_1 = arith.constant 0 : i32
    return %c0_i32, %c0_i32_0 : i32, i32
  }
  func.func @transform_3(%arg0: i32) -> (i32, i32) {
    %c0_i32 = arith.constant 0 : i32
    %c0_i32_0 = arith.constant 0 : i32
    %c0_i32_1 = arith.constant 0 : i32
    return %c0_i32, %c0_i32_0 : i32, i32
  }
  func.func @transform_4(%arg0: i32) -> (i32, i32) {
    %c0_i32 = arith.constant 0 : i32
    %c0_i32_0 = arith.constant 0 : i32
    %c0_i32_1 = arith.constant 0 : i32
    return %c0_i32, %c0_i32_0 : i32, i32
  }
  func.func @transform_5(%arg0: i32) -> (i32, i32) {
    %c0_i32 = arith.constant 0 : i32
    %c0_i32_0 = arith.constant 0 : i32
    %c0_i32_1 = arith.constant 0 : i32
    return %c0_i32, %c0_i32_0 : i32, i32
  }
  func.func @transform_6(%arg0: i32) -> (i32, i32) {
    %c0_i32 = arith.constant 0 : i32
    %c0_i32_0 = arith.constant 0 : i32
    %c0_i32_1 = arith.constant 0 : i32
    return %c0_i32, %c0_i32_0 : i32, i32
  }
  func.func @transform_7(%arg0: i32) -> i32 {
    %c0_i32 = arith.constant 0 : i32
    %c0_i32_0 = arith.constant 0 : i32
    return %c0_i32 : i32
  }
  func.func @transform_8(%arg0: i32) -> (i32, i32, i32) {
    %c0_i32 = arith.constant 0 : i32
    %c0_i32_0 = arith.constant 0 : i32
    %c0_i32_1 = arith.constant 0 : i32
    return %arg0, %c0_i32, %c0_i32_0 : i32, i32, i32
  }
}

</mosaic_0001>

<llo_original>
// kernel: tpu_custom_call.1
$region0: #{tpu_custom_call.1}
  #allocation0 [shape = 'u32[]', space=smem, size = 0x4, offset = 0x4, fixed_abs, tag = 'smem constant byte address 0x4 - core index']
  #allocation1 [shape = 'u32[144,128]{1,0:T(1,128)}', space=vmem, size = 0x12000, scoped, tag = 'internal scratch']
  #allocation2 [shape = 'bf16[1,32,128]{2,1,0:T(8,128)(2,1)}', space=vmem, size = 0x2000, scoped, tag = 'scratch operand']
  #allocation3 [shape = 'bf16[1,32,128]{2,1,0:T(8,128)(2,1)}', space=vmem, size = 0x2000, scoped, tag = 'scratch operand']
  %s0 = inlined_call_operand.hbm [shape: bf16[2,16,128], index: 0, kind: input, shape index: {}]
  %s1 = inlined_call_operand.hbm [shape: bf16[384,128], index: 1, kind: input, shape index: {}]
  %s2 = inlined_call_operand.vmem [shape: f32[1,128], index: 2, kind: input, shape index: {}]
  %s3 = inlined_call_operand.hbm [shape: bf16[384,128], index: 3, kind: input, shape index: {}]
  %s4 = inlined_call_operand.vmem [shape: f32[1,128], index: 4, kind: input, shape index: {}]
  %s5 = inlined_call_operand.hbm [shape: bf16[128,128], index: 5, kind: input, shape index: {}]
  %s6 = inlined_call_operand.vmem [shape: f32[1,128], index: 6, kind: input, shape index: {}]
  %s7 = inlined_call_operand.vmem [shape: f32[3], index: 7, kind: input, shape index: {}]
  %s8 = inlined_call_operand.hbm [shape: bf16[2,16,128], index: 8, kind: output, shape index: {}]
  %s9 = sld [smem:[#allocation0]]
  $region85: #{tpu_custom_call.1} parent=0
    _
  %s11 = ssub.s32 1, %s9
  %s12 = scalar_select 0, %s11, %s9
  $region1: #{tpu_custom_call.1} parent=0
    #allocation4 [shape = 'u8[8192]{0}', space=vmem, size = 0x2000, scoped, tag = 'input window, operand 0']
    #allocation5 [shape = 's32[2]{0}', space=sflag, size = 0x8, scoped, tag = 'scoped memory for tpu_custom_call.1']
    #allocation6 [shape = 's32[2]{0}', space=sflag, size = 0x8, scoped, tag = 'scoped memory for tpu_custom_call.1']
    #allocation7 [shape = 's32[2]{0}', space=sflag, size = 0x8, scoped, tag = 'scoped memory for tpu_custom_call.1']
    #allocation8 [shape = 'u8[98304]{0}', space=vmem, size = 0x18000, scoped, tag = 'input window, operand 1, single buffered']
    #allocation9 [shape = 's32[1]{0}', space=sflag, size = 0x4, scoped, tag = 'scoped memory for tpu_custom_call.1']
    #allocation10 [shape = 'u8[98304]{0}', space=vmem, size = 0x18000, scoped, tag = 'input window, operand 3, single buffered']
    #allocation11 [shape = 'u8[32768]{0}', space=vmem, size = 0x8000, scoped, tag = 'input window, operand 5, single buffered']
    #allocation12 [shape = 's32[1]{0}', space=sflag, size = 0x4, scoped, tag = 'scoped memory for tpu_custom_call.1']
    #allocation13 [shape = 'u8[512]{0}', space=smem, size = 0x200, scoped, tag = 'input window, operand 7, single buffered']
    #allocation14 [shape = 'u8[8192]{0}', space=vmem, size = 0x2000, scoped, tag = 'output window, operand 0']
    %13 = vsyncpa [#allocation5], 0
    %s14 = scalar_lea.sflag [#allocation5], 1
    %15 = vsyncpa %s14, 0
    %16 = vsyncpa [#allocation9], 0
    %17 = vsyncpa [#allocation12], 0
    %18 = vsyncpa [#allocation7], 0
    %19 = vsyncpa [#allocation6], 0
    %s20 = scalar_lea.sflag [#allocation6], 1
    %21 = vsyncpa %s20, 0
    loop: start=0, step=1, limit=4
    $region2: #{tpu_custom_call.1} parent=1 // loop_pre_header
      _
    $region3: #{tpu_custom_call.1} parent=1 // loop_header
      %s23 = sphi 0, %s27
      %p24 = scmp.ge.s32.totalorder %s23, 4
      %s33 = sphi 0, %s35
      %s36 = sphi 0, %s33
      %s37 = sphi 0, %s36
      %s53 = sphi 0, %s37
      %s57 = sphi 0, %s57
      %s59 = sphi 0, %s57
      %s60 = sphi 0, %s59
      %s74 = sphi 0, %s60
      %s78 = sphi 0, %s78
      %s80 = sphi 0, %s78
      %s81 = sphi 0, %s80
      %s95 = sphi 0, %s81
      %s99 = sphi 0, %s99
      %s101 = sphi 0, %s99
      %s102 = sphi 0, %s101
      %s116 = sphi 0, %s102
      %s120 = sphi 0, %s120
      %s122 = sphi 0, %s120
      %s123 = sphi 0, %s122
      %s137 = sphi 0, %s123
      %s141 = sphi 0, %s141
      %s143 = sphi 0, %s141
      %s144 = sphi 0, %s143
      %s158 = sphi 0, %s144
      %s162 = sphi 0, %s162
      %s164 = sphi 0, %s162
      %s165 = sphi 0, %s164
      %s179 = sphi 0, %s165
      %s183 = sphi 0, %s183
      %s185 = sphi 0, %s183
      %s186 = sphi 0, %s185
      %s200 = sphi 0, %s186
      %s206 = sphi 0, %s208
      %s209 = sphi 0, %s206
      %s210 = sphi 0, %s209
      %s226 = sphi 0, %s210
    $region4: #{tpu_custom_call.1} parent=1 // loop_header_branch
      %26 = sbr.rel (%p24) target = $region8
    $region5: #{tpu_custom_call.1} parent=1 // loop_body
      %s28 = ssub.s32 %s23, 1
      %s29 = ssub.s32 %s23, 2
      %s30 = sadd.s32 %s23, 1
      %s31 = ssub.s32 %s23, %s30
      %p32 = scmp.eq.s32.totalorder %s31, 0
      %s34 = sadd.s32 %s33, 1
      %s35 = scalar_select %p32, %s33, %s34
      %p38 = pneg %p32
      %p39 = scmp.eq.s32.totalorder %s23, 1
      %p40 = por %p38, %p39
      %p41 = scmp.ne.s32.totalorder %s33, %s36
      %p42 = scmp.eq.s32.totalorder %s23, 0
      %p43 = por %p41, %p42
      %p44 = scmp.ne.s32.totalorder %s33, %s36
      %p45 = scmp.eq.s32.totalorder %s28, 1
      %p46 = por %p44, %p45
      %p47 = scmp.ne.s32.totalorder %s36, %s37
      %p48 = scmp.eq.s32.totalorder %s28, 0
      %p49 = por %p47, %p48
      %p50 = scmp.ne.s32.totalorder %s36, %s37
      %p51 = scmp.eq.s32.totalorder %s29, 1
      %p52 = por %p50, %p51
      %p54 = scmp.ne.s32.totalorder %s37, %s53
      %p55 = scmp.eq.s32.totalorder %s29, 0
      %p56 = por %p54, %p55
      %s58 = sadd.s32 %s57, 1
      %p61 = scmp.eq.s32.totalorder %s23, 1
      %p62 = scmp.ne.s32.totalorder %s57, %s59
      %p63 = scmp.eq.s32.totalorder %s23, 0
      %p64 = por %p62, %p63
      %p65 = scmp.ne.s32.totalorder %s57, %s59
      %p66 = scmp.eq.s32.totalorder %s28, 1
      %p67 = por %p65, %p66
      %p68 = scmp.ne.s32.totalorder %s59, %s60
      %p69 = scmp.eq.s32.totalorder %s28, 0
      %p70 = por %p68, %p69
      %p71 = scmp.ne.s32.totalorder %s59, %s60
      %p72 = scmp.eq.s32.totalorder %s29, 1
      %p73 = por %p71, %p72
      %p75 = scmp.ne.s32.totalorder %s60, %s74
      %p76 = scmp.eq.s32.totalorder %s29, 0
      %p77 = por %p75, %p76
      %s79 = sadd.s32 %s78, 1
      %p82 = scmp.eq.s32.totalorder %s23, 1
      %p83 = scmp.ne.s32.totalorder %s78, %s80
      %p84 = scmp.eq.s32.totalorder %s23, 0
      %p85 = por %p83, %p84
      %p86 = scmp.ne.s32.totalorder %s78, %s80
      %p87 = scmp.eq.s32.totalorder %s28, 1
      %p88 = por %p86, %p87
      %p89 = scmp.ne.s32.totalorder %s80, %s81
      %p90 = scmp.eq.s32.totalorder %s28, 0
      %p91 = por %p89, %p90
      %p92 = scmp.ne.s32.totalorder %s80, %s81
      %p93 = scmp.eq.s32.totalorder %s29, 1
      %p94 = por %p92, %p93
      %p96 = scmp.ne.s32.totalorder %s81, %s95
      %p97 = scmp.eq.s32.totalorder %s29, 0
      %p98 = por %p96, %p97
      %s100 = sadd.s32 %s99, 1
      %p103 = scmp.eq.s32.totalorder %s23, 1
      %p104 = scmp.ne.s32.totalorder %s99, %s101
      %p105 = scmp.eq.s32.totalorder %s23, 0
      %p106 = por %p104, %p105
      %p107 = scmp.ne.s32.totalorder %s99, %s101
      %p108 = scmp.eq.s32.totalorder %s28, 1
      %p109 = por %p107, %p108
      %p110 = scmp.ne.s32.totalorder %s101, %s102
      %p111 = scmp.eq.s32.totalorder %s28, 0
      %p112 = por %p110, %p111
      %p113 = scmp.ne.s32.totalorder %s101, %s102
      %p114 = scmp.eq.s32.totalorder %s29, 1
      %p115 = por %p113, %p114
      %p117 = scmp.ne.s32.totalorder %s102, %s116
      %p118 = scmp.eq.s32.totalorder %s29, 0
      %p119 = por %p117, %p118
      %s121 = sadd.s32 %s120, 1
      %p124 = scmp.eq.s32.totalorder %s23, 1
      %p125 = scmp.ne.s32.totalorder %s120, %s122
      %p126 = scmp.eq.s32.totalorder %s23, 0
      %p127 = por %p125, %p126
      %p128 = scmp.ne.s32.totalorder %s120, %s122
      %p129 = scmp.eq.s32.totalorder %s28, 1
      %p130 = por %p128, %p129
      %p131 = scmp.ne.s32.totalorder %s122, %s123
      %p132 = scmp.eq.s32.totalorder %s28, 0
      %p133 = por %p131, %p132
      %p134 = scmp.ne.s32.totalorder %s122, %s123
      %p135 = scmp.eq.s32.totalorder %s29, 1
      %p136 = por %p134, %p135
      %p138 = scmp.ne.s32.totalorder %s123, %s137
      %p139 = scmp.eq.s32.totalorder %s29, 0
      %p140 = por %p138, %p139
      %s142 = sadd.s32 %s141, 1
      %p145 = scmp.eq.s32.totalorder %s23, 1
      %p146 = scmp.ne.s32.totalorder %s141, %s143
      %p147 = scmp.eq.s32.totalorder %s23, 0
      %p148 = por %p146, %p147
      %p149 = scmp.ne.s32.totalorder %s141, %s143
      %p150 = scmp.eq.s32.totalorder %s28, 1
      %p151 = por %p149, %p150
      %p152 = scmp.ne.s32.totalorder %s143, %s144
      %p153 = scmp.eq.s32.totalorder %s28, 0
      %p154 = por %p152, %p153
      %p155 = scmp.ne.s32.totalorder %s143, %s144
      %p156 = scmp.eq.s32.totalorder %s29, 1
      %p157 = por %p155, %p156
      %p159 = scmp.ne.s32.totalorder %s144, %s158
      %p160 = scmp.eq.s32.totalorder %s29, 0
      %p161 = por %p159, %p160
      %s163 = sadd.s32 %s162, 1
      %p166 = scmp.eq.s32.totalorder %s23, 1
      %p167 = scmp.ne.s32.totalorder %s162, %s164
      %p168 = scmp.eq.s32.totalorder %s23, 0
      %p169 = por %p167, %p168
      %p170 = scmp.ne.s32.totalorder %s162, %s164
      %p171 = scmp.eq.s32.totalorder %s28, 1
      %p172 = por %p170, %p171
      %p173 = scmp.ne.s32.totalorder %s164, %s165
      %p174 = scmp.eq.s32.totalorder %s28, 0
      %p175 = por %p173, %p174
      %p176 = scmp.ne.s32.totalorder %s164, %s165
      %p177 = scmp.eq.s32.totalorder %s29, 1
      %p178 = por %p176, %p177
      %p180 = scmp.ne.s32.totalorder %s165, %s179
      %p181 = scmp.eq.s32.totalorder %s29, 0
      %p182 = por %p180, %p181
      %s184 = sadd.s32 %s183, 1
      %p187 = scmp.eq.s32.totalorder %s23, 1
      %p188 = scmp.ne.s32.totalorder %s183, %s185
      %p189 = scmp.eq.s32.totalorder %s23, 0
      %p190 = por %p188, %p189
      %p191 = scmp.ne.s32.totalorder %s183, %s185
      %p192 = scmp.eq.s32.totalorder %s28, 1
      %p193 = por %p191, %p192
      %p194 = scmp.ne.s32.totalorder %s185, %s186
      %p195 = scmp.eq.s32.totalorder %s28, 0
      %p196 = por %p194, %p195
      %p197 = scmp.ne.s32.totalorder %s185, %s186
      %p198 = scmp.eq.s32.totalorder %s29, 1
      %p199 = por %p197, %p198
      %p201 = scmp.ne.s32.totalorder %s186, %s200
      %p202 = scmp.eq.s32.totalorder %s29, 0
      %p203 = por %p201, %p202
      %s204 = ssub.s32 %s23, %s30
      %p205 = scmp.eq.s32.totalorder %s204, 0
      %s207 = sadd.s32 %s206, 1
      %s208 = scalar_select %p205, %s206, %s207
      %p211 = pneg %p205
      %p212 = scmp.eq.s32.totalorder %s23, 1
      %p213 = por %p211, %p212
      %p214 = scmp.ne.s32.totalorder %s206, %s209
      %p215 = scmp.eq.s32.totalorder %s23, 0
      %p216 = por %p214, %p215
      %p217 = scmp.ne.s32.totalorder %s206, %s209
      %p218 = scmp.eq.s32.totalorder %s28, 1
      %p219 = por %p217, %p218
      %p220 = scmp.ne.s32.totalorder %s209, %s210
      %p221 = scmp.eq.s32.totalorder %s28, 0
      %p222 = por %p220, %p221
      %p223 = scmp.ne.s32.totalorder %s209, %s210
      %p224 = scmp.eq.s32.totalorder %s29, 1
      %p225 = por %p223, %p224
      %p227 = scmp.ne.s32.totalorder %s210, %s226
      %p228 = scmp.eq.s32.totalorder %s29, 0
      %p229 = por %p227, %p228
      %p230 = scmp.le.s32.totalorder 1, %s23
      %p231 = scmp.lt.s32.totalorder %s23, 3
      %p232 = pnand %p230, %p231
      %p233 = pneg %p232
      // Predicated region
      $region9: #{tpu_custom_call.1} parent=5 // pred_check
        _
      $region10: #{tpu_custom_call.1} parent=5 // pred_check_branch
        %235 = sbr.rel (%p232) target = $region12
      $region11: #{tpu_custom_call.1} parent=5 // pred_region
        %s236 = ssub.s32 %s23, 1
        // Predicated region
        $region13: #{tpu_custom_call.1} parent=11 // pred_check
          %p237 = pneg %p70
        $region14: #{tpu_custom_call.1} parent=11 // pred_check_branch
          %239 = sbr.rel (%p237) target = $region16
        $region15: #{tpu_custom_call.1} parent=11 // pred_region
          %s241 = ssub.s32 3072, 3072
          %242 = vsyncadd [#allocation9], %s241
          %s243 = sshll.u32 [#allocation8], 4
          %s244 = int_to_ptr.vmem [resolvable:$true] %s243
          %249 = dma.hbm_to_vmem [thread:$0]  %s1, 3072, %s244, [#allocation9], 64, 64, 4
        $region16: #{tpu_custom_call.1} parent=11 // pred_fallthru
          _
        // Predicated region
        $region17: #{tpu_custom_call.1} parent=11 // pred_check
          %p250 = pneg %p91
        $region18: #{tpu_custom_call.1} parent=11 // pred_check_branch
          %252 = sbr.rel (%p250) target = $region20
        $region19: #{tpu_custom_call.1} parent=11 // pred_region
          _
        $region20: #{tpu_custom_call.1} parent=11 // pred_fallthru
          _
        // Predicated region
        $region21: #{tpu_custom_call.1} parent=11 // pred_check
          %p253 = pneg %p112
        $region22: #{tpu_custom_call.1} parent=11 // pred_check_branch
          %255 = sbr.rel (%p253) target = $region24
        $region23: #{tpu_custom_call.1} parent=11 // pred_region
          %s257 = ssub.s32 3072, 3072
          %258 = vsyncadd [#allocation9], %s257
          %s259 = sshll.u32 [#allocation10], 4
          %s260 = int_to_ptr.vmem [resolvable:$true] %s259
          %265 = dma.hbm_to_vmem [thread:$0]  %s3, 3072, %s260, [#allocation9], 64, 64, 4
        $region24: #{tpu_custom_call.1} parent=11 // pred_fallthru
          _
        // Predicated region
        $region25: #{tpu_custom_call.1} parent=11 // pred_check
          %p266 = pneg %p133
        $region26: #{tpu_custom_call.1} parent=11 // pred_check_branch
          %268 = sbr.rel (%p266) target = $region28
        $region27: #{tpu_custom_call.1} parent=11 // pred_region
          _
        $region28: #{tpu_custom_call.1} parent=11 // pred_fallthru
          _
        // Predicated region
        $region29: #{tpu_custom_call.1} parent=11 // pred_check
          %p269 = pneg %p154
        $region30: #{tpu_custom_call.1} parent=11 // pred_check_branch
          %271 = sbr.rel (%p269) target = $region32
        $region31: #{tpu_custom_call.1} parent=11 // pred_region
          %s273 = ssub.s32 1024, 1024
          %274 = vsyncadd [#allocation12], %s273
          %s275 = sshll.u32 [#allocation11], 4
          %s276 = int_to_ptr.vmem [resolvable:$true] %s275
          %281 = dma.hbm_to_vmem [thread:$0]  %s5, 1024, %s276, [#allocation12], 64, 64, 4
        $region32: #{tpu_custom_call.1} parent=11 // pred_fallthru
          _
        // Predicated region
        $region33: #{tpu_custom_call.1} parent=11 // pred_check
          %p282 = pneg %p175
        $region34: #{tpu_custom_call.1} parent=11 // pred_check_branch
          %284 = sbr.rel (%p282) target = $region36
        $region35: #{tpu_custom_call.1} parent=11 // pred_region
          _
        $region36: #{tpu_custom_call.1} parent=11 // pred_fallthru
          _
        // Predicated region
        $region37: #{tpu_custom_call.1} parent=11 // pred_check
          %p285 = pneg %p196
        $region38: #{tpu_custom_call.1} parent=11 // pred_check_branch
          %287 = sbr.rel (%p285) target = $region40
        $region39: #{tpu_custom_call.1} parent=11 // pred_region
          %s289 = ssub.s32 16, 16
          %290 = vsyncadd [#allocation7], %s289
          %s292 = sshll.u32 %s7, 4
          %s293 = int_to_ptr.vmem [resolvable:$true] %s292
          %295 = dma.vmem_to_smem %s293, 16, [#allocation13], [#allocation7]
        $region40: #{tpu_custom_call.1} parent=11 // pred_fallthru
          _
      $region12: #{tpu_custom_call.1} parent=5 // pred_fallthru
        _
      %p296 = scmp.lt.s32.totalorder %s23, 2
      // Predicated region
      $region41: #{tpu_custom_call.1} parent=5 // pred_check
        %p297 = pneg %p296
      $region42: #{tpu_custom_call.1} parent=5 // pred_check_branch
        %299 = sbr.rel (%p297) target = $region44
      $region43: #{tpu_custom_call.1} parent=5 // pred_region
        // Predicated region
        $region45: #{tpu_custom_call.1} parent=43 // pred_check
          %p300 = pneg %p43
        $region46: #{tpu_custom_call.1} parent=43 // pred_check_branch
          %302 = sbr.rel (%p300) target = $region48
        $region47: #{tpu_custom_call.1} parent=43 // pred_region
          %s303 = sand.u32 %s33, 1
          %s304 = scalar_lea.sflag [#allocation5], %s303
          %s305 = sand.u32 %s33, 1
          %s306 = smul.addr %s305, 8
          %s307 = scalar_lea.vmem [#allocation4], %s306
          %s309 = ssub.s32 128, 128
          %310 = vsyncadd %s304, %s309
          %s311 = smul.addr %s23, 2
          %s312 = smul.addr %s311, 64
          %s313 = scalar_lea.hbm %s0, %s312
          %s314 = sshll.u32 %s307, 4
          %s315 = int_to_ptr.vmem [resolvable:$true] %s314
          %320 = dma.hbm_to_vmem [thread:$0]  %s313, 128, %s315, %s304, 64, 64, 4
        $region48: #{tpu_custom_call.1} parent=43 // pred_fallthru
          _
      $region44: #{tpu_custom_call.1} parent=5 // pred_fallthru
        _
      %p321 = scmp.le.s32.totalorder 1, %s23
      %p322 = scmp.lt.s32.totalorder %s23, 3
      %p323 = pnand %p321, %p322
      %p324 = pneg %p323
      // Predicated region
      $region49: #{tpu_custom_call.1} parent=5 // pred_check
        _
      $region50: #{tpu_custom_call.1} parent=5 // pred_check_branch
        %326 = sbr.rel (%p323) target = $region52
      $region51: #{tpu_custom_call.1} parent=5 // pred_region
        %s327 = ssub.s32 %s23, 1
        %s328 = sand.u32 %s36, 1
        %s329 = scalar_lea.sflag [#allocation5], %s328
        %s330 = sand.u32 %s36, 1
        %s331 = smul.addr %s330, 8
        %s332 = scalar_lea.vmem [#allocation4], %s331
        // Predicated region
        $region53: #{tpu_custom_call.1} parent=51 // pred_check
          %p333 = pneg %p49
        $region54: #{tpu_custom_call.1} parent=51 // pred_check_branch
          %335 = sbr.rel (%p333) target = $region56
        $region55: #{tpu_custom_call.1} parent=51 // pred_region
          %336 = dma.done %s329, 128
        $region56: #{tpu_custom_call.1} parent=51 // pred_fallthru
          _
        // Predicated region
        $region57: #{tpu_custom_call.1} parent=51 // pred_check
          %p337 = pneg %p70
        $region58: #{tpu_custom_call.1} parent=51 // pred_check_branch
          %339 = sbr.rel (%p337) target = $region60
        $region59: #{tpu_custom_call.1} parent=51 // pred_region
          %340 = dma.done [#allocation9], 3072
        $region60: #{tpu_custom_call.1} parent=51 // pred_fallthru
          _
        // Predicated region
        $region61: #{tpu_custom_call.1} parent=51 // pred_check
          %p341 = pneg %p112
        $region62: #{tpu_custom_call.1} parent=51 // pred_check_branch
          %343 = sbr.rel (%p341) target = $region64
        $region63: #{tpu_custom_call.1} parent=51 // pred_region
          %344 = dma.done [#allocation9], 3072
        $region64: #{tpu_custom_call.1} parent=51 // pred_fallthru
          _
        // Predicated region
        $region65: #{tpu_custom_call.1} parent=51 // pred_check
          %p345 = pneg %p154
        $region66: #{tpu_custom_call.1} parent=51 // pred_check_branch
          %347 = sbr.rel (%p345) target = $region68
        $region67: #{tpu_custom_call.1} parent=51 // pred_region
          %348 = dma.done [#allocation12], 1024
        $region68: #{tpu_custom_call.1} parent=51 // pred_fallthru
          _
        // Predicated region
        $region69: #{tpu_custom_call.1} parent=51 // pred_check
          %p349 = pneg %p196
        $region70: #{tpu_custom_call.1} parent=51 // pred_check_branch
          %351 = sbr.rel (%p349) target = $region72
        $region71: #{tpu_custom_call.1} parent=51 // pred_region
          %352 = dma.done [#allocation7], 16
        $region72: #{tpu_custom_call.1} parent=51 // pred_fallthru
          _
        %353 = sfence
        %s354 = sand.u32 %s36, 1
        %s355 = scalar_lea.sflag [#allocation5], %s354
        %s356 = sand.u32 %s36, 1
        %s357 = smul.addr %s356, 8
        %s358 = scalar_lea.vmem [#allocation4], %s357
        %p359 = pneg %p49
        %p360 = pneg %p46
        %p361 = pneg %p70
        %p362 = pneg %p67
        %p363 = pneg %p91
        %p364 = pneg %p88
        %p365 = pneg %p112
        %p366 = pneg %p109
        %p367 = pneg %p133
        %p368 = pneg %p130
        %p369 = pneg %p154
        %p370 = pneg %p151
        %p371 = pneg %p175
        %p372 = pneg %p172
        %p373 = pneg %p196
        %p374 = pneg %p193
        %p375 = pneg %p222
        %p376 = pneg %p219
        %s377 = sand.u32 %s209, 1
        %s378 = scalar_lea.sflag [#allocation6], %s377
        %s379 = sand.u32 %s209, 1
        %s380 = smul.addr %s379, 8
        %s381 = scalar_lea.vmem [#allocation14], %s380
        %383 = vst [vmem:[#allocation2] sm:$0xf] 0
        %384 = vst [vmem:[#allocation2 + $0x4] sm:$0xf] 0
        %385 = vst [vmem:[#allocation3] sm:$0xf] 0
        %386 = vst [vmem:[#allocation3 + $0x4] sm:$0xf] 0
        %v387 = vld [vmem:[%s332] sm:$0xf]
        %v388 = vld [vmem:[%s332 + $0x4] sm:$0xf]
        %389 = vst [vmem:[#allocation2 + $0x8] sm:$0xf] %v387
        %390 = vst [vmem:[#allocation2 + $0xc] sm:$0xf] %v388
        %v391 = vld [vmem:[#allocation2 + $0x4] sm:$0xc]
        %v392 = vld [vmem:[#allocation2 + $0x8] sm:$0xf]
        %v393 = vld [vmem:[#allocation2 + $0xc] sm:$0x3]
        %v394 = vld [vmem:[#allocation2 + $0x4] sm:$0x8]
        %v395 = vld [vmem:[#allocation2 + $0xc] sm:$0x7]
        %v396 = vld [vmem:[#allocation2 + $0xc] sm:$0xf]
        %v400 = vunpack.c.l.b16 %v391
        %v401 = vunpack.c.l.b16 %v392
        %v402 = vunpack.c.l.b16 %v393
        %v403 = vpack.c.b16 %v401, %v400
        %v404 = vpack.c.b16 %v402, %v402
        %v407 = vunpack.c.l.b16 %v394
        %v408 = vunpack.c.l.b16 %v395
        %v409 = vpack.c.b16 %v401, %v407
        %v410 = vpack.c.b16 %v408, %v408
        %vm411 = vcmask 1046528
        %v412 = vrot.slane %v409, 1
        %v413 = vrot.slane %v410, 1
        %v414 = vsel %vm411, %v412, %v413
        %v416 = vunpack.c.l.b16 %v396
        %v417 = vpack.c.b16 %v416, %v401
        %v418 = vrot.slane %v417, 6
        %v419 = vld [vmem:[#allocation8] sm:$0xf]
        %v420 = vld [vmem:[#allocation8 + $0x4] sm:$0xf]
        %v421 = vld [vmem:[#allocation8 + $0x8] sm:$0xf]
        %v422 = vld [vmem:[#allocation8 + $0xc] sm:$0xf]
        %v423 = vld [vmem:[#allocation8 + $0x10] sm:$0xf]
        %v424 = vld [vmem:[#allocation8 + $0x14] sm:$0xf]
        %v425 = vld [vmem:[#allocation8 + $0x18] sm:$0xf]
        %v426 = vld [vmem:[#allocation8 + $0x1c] sm:$0xf]
        %v427 = vld [vmem:[#allocation8 + $0x20] sm:$0xf]
        %v428 = vld [vmem:[#allocation8 + $0x24] sm:$0xf]
        %v429 = vld [vmem:[#allocation8 + $0x28] sm:$0xf]
        %v430 = vld [vmem:[#allocation8 + $0x2c] sm:$0xf]
        %v431 = vld [vmem:[#allocation8 + $0x30] sm:$0xf]
        %v432 = vld [vmem:[#allocation8 + $0x34] sm:$0xf]
        %v433 = vld [vmem:[#allocation8 + $0x38] sm:$0xf]
        %v434 = vld [vmem:[#allocation8 + $0x3c] sm:$0xf]
        %v435 = vld [vmem:[#allocation8 + $0x40] sm:$0xf]
        %v436 = vld [vmem:[#allocation8 + $0x44] sm:$0xf]
        %v437 = vld [vmem:[#allocation8 + $0x48] sm:$0xf]
        %v438 = vld [vmem:[#allocation8 + $0x4c] sm:$0xf]
        %v439 = vld [vmem:[#allocation8 + $0x50] sm:$0xf]
        %v440 = vld [vmem:[#allocation8 + $0x54] sm:$0xf]
        %v441 = vld [vmem:[#allocation8 + $0x58] sm:$0xf]
        %v442 = vld [vmem:[#allocation8 + $0x5c] sm:$0xf]
        %v443 = vld [vmem:[#allocation8 + $0x60] sm:$0xf]
        %v444 = vld [vmem:[#allocation8 + $0x64] sm:$0xf]
        %v445 = vld [vmem:[#allocation8 + $0x68] sm:$0xf]
        %v446 = vld [vmem:[#allocation8 + $0x6c] sm:$0xf]
        %v447 = vld [vmem:[#allocation8 + $0x70] sm:$0xf]
        %v448 = vld [vmem:[#allocation8 + $0x74] sm:$0xf]
        %v449 = vld [vmem:[#allocation8 + $0x78] sm:$0xf]
        %v450 = vld [vmem:[#allocation8 + $0x7c] sm:$0xf]
        %v451 = vld [vmem:[#allocation8 + $0x80] sm:$0xf]
        %v452 = vld [vmem:[#allocation8 + $0x84] sm:$0xf]
        %v453 = vld [vmem:[#allocation8 + $0x88] sm:$0xf]
        %v454 = vld [vmem:[#allocation8 + $0x8c] sm:$0xf]
        %v455 = vld [vmem:[#allocation8 + $0x90] sm:$0xf]
        %v456 = vld [vmem:[#allocation8 + $0x94] sm:$0xf]
        %v457 = vld [vmem:[#allocation8 + $0x98] sm:$0xf]
        %v458 = vld [vmem:[#allocation8 + $0x9c] sm:$0xf]
        %v459 = vld [vmem:[#allocation8 + $0xa0] sm:$0xf]
        %v460 = vld [vmem:[#allocation8 + $0xa4] sm:$0xf]
        %v461 = vld [vmem:[#allocation8 + $0xa8] sm:$0xf]
        %v462 = vld [vmem:[#allocation8 + $0xac] sm:$0xf]
        %v463 = vld [vmem:[#allocation8 + $0xb0] sm:$0xf]
        %v464 = vld [vmem:[#allocation8 + $0xb4] sm:$0xf]
        %v465 = vld [vmem:[#allocation8 + $0xb8] sm:$0xf]
        %v466 = vld [vmem:[#allocation8 + $0xbc] sm:$0xf]
        %v467 = vld [vmem:[%s2] sm:$0x1]
        %v469 = vlaneseq
        %v470 = vshrl.u32 %v469, 7
        %v471 = vsub.s32 0, %v470
        %v472 = vrot.slane %v467, %v471
        %vm474 = vcmask 1045504
        %v475 = vrot.slane %v403, 2
        %v476 = vrot.slane %v404, 2
        %v477 = vsel %vm474, %v475, %v476
        %v478 = vrot.slane %v414, 2
        %v479 = vrot.slane %v413, 2
        %v480 = vsel %vm474, %v478, %v479
        %v481 = vrot.slane %v418, 2
        %v482 = vsel %vm474, %v481, %v481
        %v534 = vunpack.c.l.b16 %v419
        %v535 = vunpack.c.l.b16 %v420
        %v536 = vunpack.c.l.b16 %v421
        %v537 = vunpack.c.l.b16 %v422
        %v538 = vunpack.c.l.b16 %v423
        %v539 = vunpack.c.l.b16 %v424
        %v540 = vunpack.c.l.b16 %v425
        %v541 = vunpack.c.l.b16 %v426
        %v542 = vunpack.c.l.b16 %v427
        %v543 = vunpack.c.l.b16 %v428
        %v544 = vunpack.c.l.b16 %v429
        %v545 = vunpack.c.l.b16 %v430
        %v546 = vunpack.c.l.b16 %v431
        %v547 = vunpack.c.l.b16 %v432
        %v548 = vunpack.c.l.b16 %v433
        %v549 = vunpack.c.l.b16 %v434
        %v550 = vunpack.c.l.b16 %v435
        %v551 = vunpack.c.l.b16 %v436
        %v552 = vunpack.c.l.b16 %v437
        %v553 = vunpack.c.l.b16 %v438
        %v554 = vunpack.c.l.b16 %v439
        %v555 = vunpack.c.l.b16 %v440
        %v556 = vunpack.c.l.b16 %v441
        %v557 = vunpack.c.l.b16 %v442
        %v558 = vunpack.c.l.b16 %v443
        %v559 = vunpack.c.l.b16 %v444
        %v560 = vunpack.c.l.b16 %v445
        %v561 = vunpack.c.l.b16 %v446
        %v562 = vunpack.c.l.b16 %v447
        %v563 = vunpack.c.l.b16 %v448
        %v564 = vunpack.c.l.b16 %v449
        %v565 = vunpack.c.l.b16 %v450
        %v566 = vunpack.c.l.b16 %v451
        %v567 = vunpack.c.l.b16 %v452
        %v568 = vunpack.c.l.b16 %v453
        %v569 = vunpack.c.l.b16 %v454
        %v570 = vunpack.c.l.b16 %v455
        %v571 = vunpack.c.l.b16 %v456
        %v572 = vunpack.c.l.b16 %v457
        %v573 = vunpack.c.l.b16 %v458
        %v574 = vunpack.c.l.b16 %v459
        %v575 = vunpack.c.l.b16 %v460
        %v576 = vunpack.c.l.b16 %v461
        %v577 = vunpack.c.l.b16 %v462
        %v578 = vunpack.c.l.b16 %v463
        %v579 = vunpack.c.l.b16 %v464
        %v580 = vunpack.c.l.b16 %v465
        %v581 = vunpack.c.l.b16 %v466
        %v582 = vpack.c.b16 %v535, %v534
        %v583 = vpack.c.b16 %v537, %v536
        %v584 = vpack.c.b16 %v539, %v538
        %v585 = vpack.c.b16 %v541, %v540
        %v586 = vpack.c.b16 %v543, %v542
        %v587 = vpack.c.b16 %v545, %v544
        %v588 = vpack.c.b16 %v547, %v546
        %v589 = vpack.c.b16 %v549, %v548
        %v590 = vpack.c.b16 %v551, %v550
        %v591 = vpack.c.b16 %v553, %v552
        %v592 = vpack.c.b16 %v555, %v554
        %v593 = vpack.c.b16 %v557, %v556
        %v594 = vpack.c.b16 %v559, %v558
        %v595 = vpack.c.b16 %v561, %v560
        %v596 = vpack.c.b16 %v563, %v562
        %v597 = vpack.c.b16 %v565, %v564
        %v598 = vpack.c.b16 %v567, %v566
        %v599 = vpack.c.b16 %v569, %v568
        %v600 = vpack.c.b16 %v571, %v570
        %v601 = vpack.c.b16 %v573, %v572
        %v602 = vpack.c.b16 %v575, %v574
        %v603 = vpack.c.b16 %v577, %v576
        %v604 = vpack.c.b16 %v579, %v578
        %v605 = vpack.c.b16 %v581, %v580
        %630 = vmatprep.subr.bf16.mxu0 0
        %631 = vmatpush1.bf16.msra.mxu0 %v589
        %632 = vmatprep.subr.bf16.mxu0 0
        %633 = vmatpush1.bf16.msra.mxu0 %v588
        %634 = vmatprep.subr.bf16.mxu0 0
        %635 = vmatpush1.bf16.msra.mxu0 %v587
        %636 = vmatprep.subr.bf16.mxu0 0
        %637 = vmatpush1.bf16.msra.mxu0 %v586
        %638 = vmatprep.subr.bf16.mxu0 0
        %639 = vmatpush1.bf16.msra.mxu0 %v585
        %640 = vmatprep.subr.bf16.mxu0 0
        %641 = vmatpush1.bf16.msra.mxu0 %v584
        %642 = vmatprep.subr.bf16.mxu0 0
        %643 = vmatpush1.bf16.msra.mxu0 %v583
        %644 = vmatprep.subr.bf16.mxu0 0
        %645 = vmatpush1.bf16.msra.mxu0 %v582
        %646 = vmatprep.subr.bf16.mxu0 0
        %647 = vmatpush2.bf16.msra.mxu0 %v597
        %648 = vmatprep.subr.bf16.mxu0 0
        %649 = vmatpush2.bf16.msra.mxu0 %v596
        %650 = vmatprep.subr.bf16.mxu0 0
        %651 = vmatpush2.bf16.msra.mxu0 %v595
        %652 = vmatprep.subr.bf16.mxu0 0
        %653 = vmatpush2.bf16.msra.mxu0 %v594
        %654 = vmatprep.subr.bf16.mxu0 0
        %655 = vmatpush2.bf16.msra.mxu0 %v593
        %656 = vmatprep.subr.bf16.mxu0 0
        %657 = vmatpush2.bf16.msra.mxu0 %v592
        %658 = vmatprep.subr.bf16.mxu0 0
        %659 = vmatpush2.bf16.msra.mxu0 %v591
        %660 = vmatprep.subr.bf16.mxu0 0
        %661 = vmatpush2.bf16.msra.mxu0 %v590
        %662 = vmatprep.mubr.bf16.mxu0 %v480
        %663 = vmatmul.mubr.bf16.gmra.mxu0 %v477
        %v664 = vpop.f32.mrf.mxu0
        %v665 = vadd.f32 %v472, %v664
        %v666 = vpop.f32.mrf.mxu0
        %v667 = vpop.f32.mrf.mxu0
        %v668 = vadd.f32 %v472, %v667
        %v669 = vpop.f32.mrf.mxu0
        %670 = vdwg.mxu0
        %671 = vmatprep.subr.bf16.mxu0 0
        %672 = vmatpush1.bf16.msra.mxu0 %v605
        %673 = vmatprep.subr.bf16.mxu0 0
        %674 = vmatpush1.bf16.msra.mxu0 %v604
        %675 = vmatprep.subr.bf16.mxu0 0
        %676 = vmatpush1.bf16.msra.mxu0 %v603
        %677 = vmatprep.subr.bf16.mxu0 0
        %678 = vmatpush1.bf16.msra.mxu0 %v602
        %679 = vmatprep.subr.bf16.mxu0 0
        %680 = vmatpush1.bf16.msra.mxu0 %v601
        %681 = vmatprep.subr.bf16.mxu0 0
        %682 = vmatpush1.bf16.msra.mxu0 %v600
        %683 = vmatprep.subr.bf16.mxu0 0
        %684 = vmatpush1.bf16.msra.mxu0 %v599
        %685 = vmatprep.subr.bf16.mxu0 0
        %686 = vmatpush1.bf16.msra.mxu0 %v598
        %687 = vmatprep.subr.bf16.mxu0 0
        %688 = vmatpush2.bf16.msra.mxu0 0
        %689 = vmatprep.subr.bf16.mxu0 0
        %690 = vmatpush2.bf16.msra.mxu0 0
        %691 = vmatprep.subr.bf16.mxu0 0
        %692 = vmatpush2.bf16.msra.mxu0 0
        %693 = vmatprep.subr.bf16.mxu0 0
        %694 = vmatpush2.bf16.msra.mxu0 0
        %695 = vmatprep.subr.bf16.mxu0 0
        %696 = vmatpush2.bf16.msra.mxu0 0
        %697 = vmatprep.subr.bf16.mxu0 0
        %698 = vmatpush2.bf16.msra.mxu0 0
        %699 = vmatprep.subr.bf16.mxu0 0
        %700 = vmatpush2.bf16.msra.mxu0 0
        %701 = vmatprep.subr.bf16.mxu0 0
        %702 = vmatpush2.bf16.msra.mxu0 0
        %703 = vmatprep.mubr.bf16.mxu0 0
        %704 = vmatmul.mubr.bf16.gmra.mxu0 %v482
        %v705 = vpop.f32.mrf.mxu0
        %v706 = vadd.f32 %v665, %v705
        %v707 = vpop.f32.mrf.mxu0
        %v708 = vpop.f32.mrf.mxu0
        %v709 = vadd.f32 %v668, %v708
        %v710 = vpop.f32.mrf.mxu0
        %711 = vdwg.mxu0
        %s712 = sld [smem:[#allocation13]]
        %vm713 = vcmp.gt.f32.partialorder %v706, 0.0
        %vm714 = vcmp.gt.f32.partialorder %v709, 0.0
        %v715 = vstv %s712
        %v716 = vmul.f32 %v715, %v706
        %v717 = vmul.f32 %v715, %v709
        %v718 = vsel %vm713, %v706, %v716
        %v719 = vsel %vm714, %v709, %v717
        %v720 = vpack.c.bf16 %v719, %v718
        %v722 = vunpack.c.l.b16 %v720
        %v723 = vunpack.c.h.b16 %v720
        %v724 = vpack.c.b16 %v722, %v722
        %v725 = vpack.c.b16 %v723, %v723
        %728 = vst [vmem:[#allocation3 + $0x8] sm:$0xf] %v724
        %729 = vst [vmem:[#allocation3 + $0xc] sm:$0xf] %v725
        %v730 = vld [vmem:[#allocation3 + $0x4] sm:$0xc]
        %v731 = vld [vmem:[#allocation3 + $0x8] sm:$0xf]
        %v732 = vld [vmem:[#allocation3 + $0xc] sm:$0x3]
        %v733 = vld [vmem:[#allocation3 + $0x4] sm:$0x8]
        %v734 = vld [vmem:[#allocation3 + $0xc] sm:$0x7]
        %v735 = vld [vmem:[#allocation3 + $0xc] sm:$0xf]
        %v739 = vunpack.c.l.b16 %v730
        %v740 = vunpack.c.l.b16 %v731
        %v741 = vunpack.c.l.b16 %v732
        %v742 = vpack.c.b16 %v740, %v739
        %v743 = vpack.c.b16 %v741, %v741
        %v746 = vunpack.c.l.b16 %v733
        %v747 = vunpack.c.l.b16 %v734
        %v748 = vpack.c.b16 %v740, %v746
        %v749 = vpack.c.b16 %v747, %v747
        %v750 = vrot.slane %v748, 1
        %v751 = vrot.slane %v749, 1
        %v752 = vsel %vm411, %v750, %v751
        %v754 = vunpack.c.l.b16 %v735
        %v755 = vpack.c.b16 %v754, %v740
        %v756 = vrot.slane %v755, 6
        %v757 = vld [vmem:[#allocation10] sm:$0xf]
        %v758 = vld [vmem:[#allocation10 + $0x4] sm:$0xf]
        %v759 = vld [vmem:[#allocation10 + $0x8] sm:$0xf]
        %v760 = vld [vmem:[#allocation10 + $0xc] sm:$0xf]
        %v761 = vld [vmem:[#allocation10 + $0x10] sm:$0xf]
        %v762 = vld [vmem:[#allocation10 + $0x14] sm:$0xf]
        %v763 = vld [vmem:[#allocation10 + $0x18] sm:$0xf]
        %v764 = vld [vmem:[#allocation10 + $0x1c] sm:$0xf]
        %v765 = vld [vmem:[#allocation10 + $0x20] sm:$0xf]
        %v766 = vld [vmem:[#allocation10 + $0x24] sm:$0xf]
        %v767 = vld [vmem:[#allocation10 + $0x28] sm:$0xf]
        %v768 = vld [vmem:[#allocation10 + $0x2c] sm:$0xf]
        %v769 = vld [vmem:[#allocation10 + $0x30] sm:$0xf]
        %v770 = vld [vmem:[#allocation10 + $0x34] sm:$0xf]
        %v771 = vld [vmem:[#allocation10 + $0x38] sm:$0xf]
        %v772 = vld [vmem:[#allocation10 + $0x3c] sm:$0xf]
        %v773 = vld [vmem:[#allocation10 + $0x40] sm:$0xf]
        %v774 = vld [vmem:[#allocation10 + $0x44] sm:$0xf]
        %v775 = vld [vmem:[#allocation10 + $0x48] sm:$0xf]
        %v776 = vld [vmem:[#allocation10 + $0x4c] sm:$0xf]
        %v777 = vld [vmem:[#allocation10 + $0x50] sm:$0xf]
        %v778 = vld [vmem:[#allocation10 + $0x54] sm:$0xf]
        %v779 = vld [vmem:[#allocation10 + $0x58] sm:$0xf]
        %v780 = vld [vmem:[#allocation10 + $0x5c] sm:$0xf]
        %v781 = vld [vmem:[#allocation10 + $0x60] sm:$0xf]
        %v782 = vld [vmem:[#allocation10 + $0x64] sm:$0xf]
        %v783 = vld [vmem:[#allocation10 + $0x68] sm:$0xf]
        %v784 = vld [vmem:[#allocation10 + $0x6c] sm:$0xf]
        %v785 = vld [vmem:[#allocation10 + $0x70] sm:$0xf]
        %v786 = vld [vmem:[#allocation10 + $0x74] sm:$0xf]
        %v787 = vld [vmem:[#allocation10 + $0x78] sm:$0xf]
        %v788 = vld [vmem:[#allocation10 + $0x7c] sm:$0xf]
        %v789 = vld [vmem:[#allocation10 + $0x80] sm:$0xf]
        %v790 = vld [vmem:[#allocation10 + $0x84] sm:$0xf]
        %v791 = vld [vmem:[#allocation10 + $0x88] sm:$0xf]
        %v792 = vld [vmem:[#allocation10 + $0x8c] sm:$0xf]
        %v793 = vld [vmem:[#allocation10 + $0x90] sm:$0xf]
        %v794 = vld [vmem:[#allocation10 + $0x94] sm:$0xf]
        %v795 = vld [vmem:[#allocation10 + $0x98] sm:$0xf]
        %v796 = vld [vmem:[#allocation10 + $0x9c] sm:$0xf]
        %v797 = vld [vmem:[#allocation10 + $0xa0] sm:$0xf]
        %v798 = vld [vmem:[#allocation10 + $0xa4] sm:$0xf]
        %v799 = vld [vmem:[#allocation10 + $0xa8] sm:$0xf]
        %v800 = vld [vmem:[#allocation10 + $0xac] sm:$0xf]
        %v801 = vld [vmem:[#allocation10 + $0xb0] sm:$0xf]
        %v802 = vld [vmem:[#allocation10 + $0xb4] sm:$0xf]
        %v803 = vld [vmem:[#allocation10 + $0xb8] sm:$0xf]
        %v804 = vld [vmem:[#allocation10 + $0xbc] sm:$0xf]
        %v805 = vld [vmem:[%s4] sm:$0x1]
        %v807 = vlaneseq
        %v808 = vshrl.u32 %v807, 7
        %v809 = vsub.s32 0, %v808
        %v810 = vrot.slane %v805, %v809
        %v812 = vrot.slane %v742, 2
        %v813 = vrot.slane %v743, 2
        %v814 = vsel %vm474, %v812, %v813
        %v815 = vrot.slane %v752, 2
        %v816 = vrot.slane %v751, 2
        %v817 = vsel %vm474, %v815, %v816
        %v818 = vrot.slane %v756, 2
        %v819 = vsel %vm474, %v818, %v818
        %v871 = vunpack.c.l.b16 %v757
        %v872 = vunpack.c.l.b16 %v758
        %v873 = vunpack.c.l.b16 %v759
        %v874 = vunpack.c.l.b16 %v760
        %v875 = vunpack.c.l.b16 %v761
        %v876 = vunpack.c.l.b16 %v762
        %v877 = vunpack.c.l.b16 %v763
        %v878 = vunpack.c.l.b16 %v764
        %v879 = vunpack.c.l.b16 %v765
        %v880 = vunpack.c.l.b16 %v766
        %v881 = vunpack.c.l.b16 %v767
        %v882 = vunpack.c.l.b16 %v768
        %v883 = vunpack.c.l.b16 %v769
        %v884 = vunpack.c.l.b16 %v770
        %v885 = vunpack.c.l.b16 %v771
        %v886 = vunpack.c.l.b16 %v772
        %v887 = vunpack.c.l.b16 %v773
        %v888 = vunpack.c.l.b16 %v774
        %v889 = vunpack.c.l.b16 %v775
        %v890 = vunpack.c.l.b16 %v776
        %v891 = vunpack.c.l.b16 %v777
        %v892 = vunpack.c.l.b16 %v778
        %v893 = vunpack.c.l.b16 %v779
        %v894 = vunpack.c.l.b16 %v780
        %v895 = vunpack.c.l.b16 %v781
        %v896 = vunpack.c.l.b16 %v782
        %v897 = vunpack.c.l.b16 %v783
        %v898 = vunpack.c.l.b16 %v784
        %v899 = vunpack.c.l.b16 %v785
        %v900 = vunpack.c.l.b16 %v786
        %v901 = vunpack.c.l.b16 %v787
        %v902 = vunpack.c.l.b16 %v788
        %v903 = vunpack.c.l.b16 %v789
        %v904 = vunpack.c.l.b16 %v790
        %v905 = vunpack.c.l.b16 %v791
        %v906 = vunpack.c.l.b16 %v792
        %v907 = vunpack.c.l.b16 %v793
        %v908 = vunpack.c.l.b16 %v794
        %v909 = vunpack.c.l.b16 %v795
        %v910 = vunpack.c.l.b16 %v796
        %v911 = vunpack.c.l.b16 %v797
        %v912 = vunpack.c.l.b16 %v798
        %v913 = vunpack.c.l.b16 %v799
        %v914 = vunpack.c.l.b16 %v800
        %v915 = vunpack.c.l.b16 %v801
        %v916 = vunpack.c.l.b16 %v802
        %v917 = vunpack.c.l.b16 %v803
        %v918 = vunpack.c.l.b16 %v804
        %v919 = vpack.c.b16 %v872, %v871
        %v920 = vpack.c.b16 %v874, %v873
        %v921 = vpack.c.b16 %v876, %v875
        %v922 = vpack.c.b16 %v878, %v877
        %v923 = vpack.c.b16 %v880, %v879
        %v924 = vpack.c.b16 %v882, %v881
        %v925 = vpack.c.b16 %v884, %v883
        %v926 = vpack.c.b16 %v886, %v885
        %v927 = vpack.c.b16 %v888, %v887
        %v928 = vpack.c.b16 %v890, %v889
        %v929 = vpack.c.b16 %v892, %v891
        %v930 = vpack.c.b16 %v894, %v893
        %v931 = vpack.c.b16 %v896, %v895
        %v932 = vpack.c.b16 %v898, %v897
        %v933 = vpack.c.b16 %v900, %v899
        %v934 = vpack.c.b16 %v902, %v901
        %v935 = vpack.c.b16 %v904, %v903
        %v936 = vpack.c.b16 %v906, %v905
        %v937 = vpack.c.b16 %v908, %v907
        %v938 = vpack.c.b16 %v910, %v909
        %v939 = vpack.c.b16 %v912, %v911
        %v940 = vpack.c.b16 %v914, %v913
        %v941 = vpack.c.b16 %v916, %v915
        %v942 = vpack.c.b16 %v918, %v917
        %967 = vmatprep.subr.bf16.mxu0 0
        %968 = vmatpush1.bf16.msra.mxu0 %v926
        %969 = vmatprep.subr.bf16.mxu0 0
        %970 = vmatpush1.bf16.msra.mxu0 %v925
        %971 = vmatprep.subr.bf16.mxu0 0
        %972 = vmatpush1.bf16.msra.mxu0 %v924
        %973 = vmatprep.subr.bf16.mxu0 0
        %974 = vmatpush1.bf16.msra.mxu0 %v923
        %975 = vmatprep.subr.bf16.mxu0 0
        %976 = vmatpush1.bf16.msra.mxu0 %v922
        %977 = vmatprep.subr.bf16.mxu0 0
        %978 = vmatpush1.bf16.msra.mxu0 %v921
        %979 = vmatprep.subr.bf16.mxu0 0
        %980 = vmatpush1.bf16.msra.mxu0 %v920
        %981 = vmatprep.subr.bf16.mxu0 0
        %982 = vmatpush1.bf16.msra.mxu0 %v919
        %983 = vmatprep.subr.bf16.mxu0 0
        %984 = vmatpush2.bf16.msra.mxu0 %v934
        %985 = vmatprep.subr.bf16.mxu0 0
        %986 = vmatpush2.bf16.msra.mxu0 %v933
        %987 = vmatprep.subr.bf16.mxu0 0
        %988 = vmatpush2.bf16.msra.mxu0 %v932
        %989 = vmatprep.subr.bf16.mxu0 0
        %990 = vmatpush2.bf16.msra.mxu0 %v931
        %991 = vmatprep.subr.bf16.mxu0 0
        %992 = vmatpush2.bf16.msra.mxu0 %v930
        %993 = vmatprep.subr.bf16.mxu0 0
        %994 = vmatpush2.bf16.msra.mxu0 %v929
        %995 = vmatprep.subr.bf16.mxu0 0
        %996 = vmatpush2.bf16.msra.mxu0 %v928
        %997 = vmatprep.subr.bf16.mxu0 0
        %998 = vmatpush2.bf16.msra.mxu0 %v927
        %999 = vmatprep.mubr.bf16.mxu0 %v817
        %1000 = vmatmul.mubr.bf16.gmra.mxu0 %v814
        %v1001 = vpop.f32.mrf.mxu0
        %v1002 = vadd.f32 %v810, %v1001
        %v1003 = vpop.f32.mrf.mxu0
        %v1004 = vpop.f32.mrf.mxu0
        %v1005 = vadd.f32 %v810, %v1004
        %v1006 = vpop.f32.mrf.mxu0
        %1007 = vdwg.mxu0
        %1008 = vmatprep.subr.bf16.mxu0 0
        %1009 = vmatpush1.bf16.msra.mxu0 %v942
        %1010 = vmatprep.subr.bf16.mxu0 0
        %1011 = vmatpush1.bf16.msra.mxu0 %v941
        %1012 = vmatprep.subr.bf16.mxu0 0
        %1013 = vmatpush1.bf16.msra.mxu0 %v940
        %1014 = vmatprep.subr.bf16.mxu0 0
        %1015 = vmatpush1.bf16.msra.mxu0 %v939
        %1016 = vmatprep.subr.bf16.mxu0 0
        %1017 = vmatpush1.bf16.msra.mxu0 %v938
        %1018 = vmatprep.subr.bf16.mxu0 0
        %1019 = vmatpush1.bf16.msra.mxu0 %v937
        %1020 = vmatprep.subr.bf16.mxu0 0
        %1021 = vmatpush1.bf16.msra.mxu0 %v936
        %1022 = vmatprep.subr.bf16.mxu0 0
        %1023 = vmatpush1.bf16.msra.mxu0 %v935
        %1024 = vmatprep.subr.bf16.mxu0 0
        %1025 = vmatpush2.bf16.msra.mxu0 0
        %1026 = vmatprep.subr.bf16.mxu0 0
        %1027 = vmatpush2.bf16.msra.mxu0 0
        %1028 = vmatprep.subr.bf16.mxu0 0
        %1029 = vmatpush2.bf16.msra.mxu0 0
        %1030 = vmatprep.subr.bf16.mxu0 0
        %1031 = vmatpush2.bf16.msra.mxu0 0
        %1032 = vmatprep.subr.bf16.mxu0 0
        %1033 = vmatpush2.bf16.msra.mxu0 0
        %1034 = vmatprep.subr.bf16.mxu0 0
        %1035 = vmatpush2.bf16.msra.mxu0 0
        %1036 = vmatprep.subr.bf16.mxu0 0
        %1037 = vmatpush2.bf16.msra.mxu0 0
        %1038 = vmatprep.subr.bf16.mxu0 0
        %1039 = vmatpush2.bf16.msra.mxu0 0
        %1040 = vmatprep.mubr.bf16.mxu0 0
        %1041 = vmatmul.mubr.bf16.gmra.mxu0 %v819
        %v1042 = vpop.f32.mrf.mxu0
        %v1043 = vadd.f32 %v1002, %v1042
        %v1044 = vpop.f32.mrf.mxu0
        %v1045 = vpop.f32.mrf.mxu0
        %v1046 = vadd.f32 %v1005, %v1045
        %v1047 = vpop.f32.mrf.mxu0
        %1048 = vdwg.mxu0
        %s1049 = sld [smem:[#allocation13 + $0x1]]
        %vm1050 = vcmp.gt.f32.partialorder %v1043, 0.0
        %vm1051 = vcmp.gt.f32.partialorder %v1046, 0.0
        %v1052 = vstv %s1049
        %v1053 = vmul.f32 %v1052, %v1043
        %v1054 = vmul.f32 %v1052, %v1046
        %v1055 = vsel %vm1050, %v1043, %v1053
        %v1056 = vsel %vm1051, %v1046, %v1054
        %v1057 = vld [vmem:[%s332] sm:$0xf]
        %v1058 = vld [vmem:[%s332 + $0x4] sm:$0xf]
        %v1059 = vld [vmem:[#allocation11] sm:$0xf]
        %v1060 = vld [vmem:[#allocation11 + $0x4] sm:$0xf]
        %v1061 = vld [vmem:[#allocation11 + $0x8] sm:$0xf]
        %v1062 = vld [vmem:[#allocation11 + $0xc] sm:$0xf]
        %v1063 = vld [vmem:[#allocation11 + $0x10] sm:$0xf]
        %v1064 = vld [vmem:[#allocation11 + $0x14] sm:$0xf]
        %v1065 = vld [vmem:[#allocation11 + $0x18] sm:$0xf]
        %v1066 = vld [vmem:[#allocation11 + $0x1c] sm:$0xf]
        %v1067 = vld [vmem:[#allocation11 + $0x20] sm:$0xf]
        %v1068 = vld [vmem:[#allocation11 + $0x24] sm:$0xf]
        %v1069 = vld [vmem:[#allocation11 + $0x28] sm:$0xf]
        %v1070 = vld [vmem:[#allocation11 + $0x2c] sm:$0xf]
        %v1071 = vld [vmem:[#allocation11 + $0x30] sm:$0xf]
        %v1072 = vld [vmem:[#allocation11 + $0x34] sm:$0xf]
        %v1073 = vld [vmem:[#allocation11 + $0x38] sm:$0xf]
        %v1074 = vld [vmem:[#allocation11 + $0x3c] sm:$0xf]
        %v1075 = vld [vmem:[%s6] sm:$0x1]
        %v1077 = vlaneseq
        %v1078 = vshrl.u32 %v1077, 7
        %v1079 = vsub.s32 0, %v1078
        %v1080 = vrot.slane %v1075, %v1079
        %v1084 = vunpack.c.l.b16 %v1057
        %v1085 = vunpack.c.l.b16 %v1058
        %v1086 = vpack.c.b16 %v1085, %v1084
        %v1104 = vunpack.c.l.b16 %v1059
        %v1105 = vunpack.c.l.b16 %v1060
        %v1106 = vunpack.c.l.b16 %v1061
        %v1107 = vunpack.c.l.b16 %v1062
        %v1108 = vunpack.c.l.b16 %v1063
        %v1109 = vunpack.c.l.b16 %v1064
        %v1110 = vunpack.c.l.b16 %v1065
        %v1111 = vunpack.c.l.b16 %v1066
        %v1112 = vunpack.c.l.b16 %v1067
        %v1113 = vunpack.c.l.b16 %v1068
        %v1114 = vunpack.c.l.b16 %v1069
        %v1115 = vunpack.c.l.b16 %v1070
        %v1116 = vunpack.c.l.b16 %v1071
        %v1117 = vunpack.c.l.b16 %v1072
        %v1118 = vunpack.c.l.b16 %v1073
        %v1119 = vunpack.c.l.b16 %v1074
        %v1120 = vpack.c.b16 %v1105, %v1104
        %v1121 = vpack.c.b16 %v1107, %v1106
        %v1122 = vpack.c.b16 %v1109, %v1108
        %v1123 = vpack.c.b16 %v1111, %v1110
        %v1124 = vpack.c.b16 %v1113, %v1112
        %v1125 = vpack.c.b16 %v1115, %v1114
        %v1126 = vpack.c.b16 %v1117, %v1116
        %v1127 = vpack.c.b16 %v1119, %v1118
        %1136 = vmatprep.subr.bf16.mxu0 0
        %1137 = vmatpush1.bf16.msra.mxu0 %v1127
        %1138 = vmatprep.subr.bf16.mxu0 0
        %1139 = vmatpush1.bf16.msra.mxu0 %v1126
        %1140 = vmatprep.subr.bf16.mxu0 0
        %1141 = vmatpush1.bf16.msra.mxu0 %v1125
        %1142 = vmatprep.subr.bf16.mxu0 0
        %1143 = vmatpush1.bf16.msra.mxu0 %v1124
        %1144 = vmatprep.subr.bf16.mxu0 0
        %1145 = vmatpush1.bf16.msra.mxu0 %v1123
        %1146 = vmatprep.subr.bf16.mxu0 0
        %1147 = vmatpush1.bf16.msra.mxu0 %v1122
        %1148 = vmatprep.subr.bf16.mxu0 0
        %1149 = vmatpush1.bf16.msra.mxu0 %v1121
        %1150 = vmatprep.subr.bf16.mxu0 0
        %1151 = vmatpush1.bf16.msra.mxu0 %v1120
        %1152 = vmatprep.subr.bf16.mxu0 0
        %1153 = vmatpush2.bf16.msra.mxu0 0
        %1154 = vmatprep.subr.bf16.mxu0 0
        %1155 = vmatpush2.bf16.msra.mxu0 0
        %1156 = vmatprep.subr.bf16.mxu0 0
        %1157 = vmatpush2.bf16.msra.mxu0 0
        %1158 = vmatprep.subr.bf16.mxu0 0
        %1159 = vmatpush2.bf16.msra.mxu0 0
        %1160 = vmatprep.subr.bf16.mxu0 0
        %1161 = vmatpush2.bf16.msra.mxu0 0
        %1162 = vmatprep.subr.bf16.mxu0 0
        %1163 = vmatpush2.bf16.msra.mxu0 0
        %1164 = vmatprep.subr.bf16.mxu0 0
        %1165 = vmatpush2.bf16.msra.mxu0 0
        %1166 = vmatprep.subr.bf16.mxu0 0
        %1167 = vmatpush2.bf16.msra.mxu0 0
        %1168 = vmatprep.mubr.bf16.mxu0 0
        %1169 = vmatmul.mubr.bf16.gmra.mxu0 %v1086
        %v1170 = vpop.f32.mrf.mxu0
        %v1171 = vadd.f32 %v1080, %v1170
        %v1172 = vpop.f32.mrf.mxu0
        %v1173 = vpop.f32.mrf.mxu0
        %v1174 = vadd.f32 %v1080, %v1173
        %v1175 = vpop.f32.mrf.mxu0
        %1176 = vdwg.mxu0
        %v1177 = vadd.f32 %v1055, %v1171
        %v1178 = vadd.f32 %v1056, %v1174
        %s1179 = sld [smem:[#allocation13 + $0x2]]
        %vm1180 = vcmp.gt.f32.partialorder %v1177, 0.0
        %vm1181 = vcmp.gt.f32.partialorder %v1178, 0.0
        %v1182 = vstv %s1179
        %v1183 = vmul.f32 %v1182, %v1177
        %v1184 = vmul.f32 %v1182, %v1178
        %v1185 = vsel %vm1180, %v1177, %v1183
        %v1186 = vsel %vm1181, %v1178, %v1184
        %v1187 = vpack.c.bf16 %v1186, %v1185
        %v1189 = vunpack.c.l.b16 %v1187
        %v1190 = vunpack.c.h.b16 %v1187
        %v1191 = vpack.c.b16 %v1189, %v1189
        %v1192 = vpack.c.b16 %v1190, %v1190
        %1195 = vst [vmem:[%s381] sm:$0xf] %v1191
        %1196 = vst [vmem:[%s381 + $0x4] sm:$0xf] %v1192
        %s1197 = sand.u32 %s209, 1
        %s1198 = scalar_lea.sflag [#allocation6], %s1197
        %s1199 = sand.u32 %s209, 1
        %s1200 = smul.addr %s1199, 8
        %s1201 = scalar_lea.vmem [#allocation14], %s1200
        // Predicated region
        $region73: #{tpu_custom_call.1} parent=51 // pred_check
          %p1202 = pneg %p219
        $region74: #{tpu_custom_call.1} parent=51 // pred_check_branch
          %1204 = sbr.rel (%p1202) target = $region76
        $region75: #{tpu_custom_call.1} parent=51 // pred_region
          %s1206 = ssub.s32 128, 128
          %1207 = vsyncadd %s1198, %s1206
          %s1208 = smul.addr %s28, 2
          %s1209 = smul.addr %s1208, 64
          %s1210 = scalar_lea.hbm %s8, %s1209
          %s1211 = sshll.u32 %s1201, 4
          %s1212 = int_to_ptr.vmem [resolvable:$true] %s1211
          %1217 = dma.vmem_to_hbm [thread:$0]  %s1212, 128, %s1210, %s1198, 64, 64, 4
        $region76: #{tpu_custom_call.1} parent=51 // pred_fallthru
          _
      $region52: #{tpu_custom_call.1} parent=5 // pred_fallthru
        _
      %p1218 = scmp.le.s32.totalorder 2, %s23
      // Predicated region
      $region77: #{tpu_custom_call.1} parent=5 // pred_check
        %p1219 = pneg %p1218
      $region78: #{tpu_custom_call.1} parent=5 // pred_check_branch
        %1221 = sbr.rel (%p1219) target = $region80
      $region79: #{tpu_custom_call.1} parent=5 // pred_region
        %s1222 = ssub.s32 %s23, 2
        // Predicated region
        $region81: #{tpu_custom_call.1} parent=79 // pred_check
          %p1223 = pneg %p225
        $region82: #{tpu_custom_call.1} parent=79 // pred_check_branch
          %1225 = sbr.rel (%p1223) target = $region84
        $region83: #{tpu_custom_call.1} parent=79 // pred_region
          %s1226 = sand.u32 %s210, 1
          %s1227 = scalar_lea.sflag [#allocation6], %s1226
          %s1228 = sand.u32 %s210, 1
          %s1229 = smul.addr %s1228, 8
          %s1230 = scalar_lea.vmem [#allocation14], %s1229
          %1231 = dma.done %s1227, 128
        $region84: #{tpu_custom_call.1} parent=79 // pred_fallthru
          _
      $region80: #{tpu_custom_call.1} parent=5 // pred_fallthru
        _
    $region6: #{tpu_custom_call.1} parent=1 // loop_footer
      %s27 = sadd.s32 1, %s23
    $region7: #{tpu_custom_call.1} parent=1 // loop_footer_branch
      %22 = sbr.rel target = $region3
    $region8: #{tpu_custom_call.1} parent=1 // loop_exit
      _
    %1232 = vsyncpa [#allocation5], 1
    %s1233 = scalar_lea.sflag [#allocation5], 1
    %1234 = vsyncpa %s1233, 1
    %1235 = vsyncpa [#allocation9], 1
    %1236 = vsyncpa [#allocation12], 1
    %1237 = vsyncpa [#allocation6], 1
    %s1238 = scalar_lea.sflag [#allocation6], 1
    %1239 = vsyncpa %s1238, 1
    %1240 = vsyncpa [#allocation7], 1
    %s1241 = scalar_lea.sflag [#allocation7], 1
    %1242 = vsyncpa %s1241, 1

</llo_original>
